<compile_context>
chip_gen: v6e
topology: v6e:2x2x1
jax: 0.10.0
libtpu: 0.0.40
codegen_flags: <defaults>
</compile_context>

<pallas_src>
import functools
import math

import jax
import jax.numpy as jnp
from jax import lax
from jax.experimental import pallas as pl
from jax.experimental.pallas import tpu as pltpu


def _sdpa_kernel(*refs, sqrt_d, has_mask, approx_recip, mxu_bf16):
    if has_mask:
        q_ref, k_ref, v_ref, mask_ref, out_ref, attn_ref = refs
    else:
        q_ref, k_ref, v_ref, out_ref, attn_ref = refs

    q = q_ref[0]          # (Tq, D)
    k = k_ref[0]          # (Lk, D)
    v = v_ref[0]          # (Lk, D)

    if mxu_bf16 and q.dtype == jnp.float32:
        q = q.astype(jnp.bfloat16)
        k = k.astype(jnp.bfloat16)

    # scores = q @ k^T : contract the D axes directly (no XLU transpose of K).
    s = lax.dot_general(q, k, (((1,), (1,)), ((), ())),
                        preferred_element_type=jnp.float32)        # (Tq, Lk) f32

    # Numerically stable softmax (f32 math).
    s_max = jnp.max(s, axis=-1, keepdims=True)
    e = jnp.exp(s - s_max)                                         # (Tq, Lk)
    denom = jnp.sum(e, axis=-1, keepdims=True)                     # (Tq, 1)
    # 1/denom on the EUP (approx) frees VALU slots; fused with the sqrt(d) scale.
    scale = pl.reciprocal(denom, approx=approx_recip) * sqrt_d     # (Tq, 1) f32

    # Unscaled, masked probabilities feed the PV matmul; scale is applied afterwards
    # to the small (Tq, D) f32 accumulator (less (Tq,Lk) VALU work, better precision).
    if has_mask:
        p = e * mask_ref[0].astype(jnp.float32)                    # (Tq, Lk) f32
    else:
        p = e

    mm_dtype = jnp.bfloat16 if (mxu_bf16 and v.dtype == jnp.float32) else v.dtype
    acc = lax.dot_general(p.astype(mm_dtype), v.astype(mm_dtype),
                          (((1,), (0,)), ((), ())),
                          preferred_element_type=jnp.float32)      # (Tq, D) f32

    out_ref[0] = (acc * scale).astype(out_ref.dtype)
    attn_ref[0] = (p * scale).astype(attn_ref.dtype)


def _vmem_budgets():
    """(tiling budget, vmem_limit_bytes) derived from this chip's VMEM capacity."""
    try:
        cap = int(pltpu.get_tpu_info().vmem_capacity_bytes)
    except Exception:
        cap = 64 * 1024 * 1024                      # conservative fallback (v7x-sized)
    tile_budget = cap // 2                          # leave headroom for compiler scratch
    vmem_limit = min(int(cap * 0.8), 112 * 1024 * 1024)
    return tile_budget, vmem_limit


def _choose_tq(Lq, Lk, D, in_bytes, mask_bytes, out_bytes, attn_bytes, budget):
    """Largest q-tile whose VMEM footprint fits `budget`.

    K/V are single-buffered (pl.Buffered(1)); q/out/mask/attn tiles are double-buffered
    by the default pipeline; f32 softmax temporaries are counted conservatively.
    """
    kv = 2 * Lk * D * in_bytes                               # K + V, single buffer each

    def fits(tq):
        tiles = 2 * (tq * D * (in_bytes + out_bytes)         # q tile + out tile (x2 bufs)
                     + tq * Lk * (mask_bytes + attn_bytes))  # mask tile + attn tile (x2)
        temps = 3 * tq * Lk * 4 + tq * D * 4                 # f32 s/e/p + (Tq,D) acc
        return kv + tiles + temps <= budget

    for tq in (1024, 512, 256, 128):
        if tq <= Lq and fits(tq):
            return tq
    # TODO(synk): when even Tq<=128 with full resident K/V does not fit (very long Lk,
    # mainly on v7x), switch to flash-style online-softmax tiling over Lk.
    return min(Lq, 128)


def scaled_dot_product_attention(q, k, v, d, mask=None, *,
                                 approx_recip=True, mxu_bf16=False):
    """q: [B, Lq, D], k/v: [B, Lk, D], mask: [B, Lq, Lk] (any numeric dtype) or None."""
    B, Lq, D = q.shape
    Lk = k.shape[1]

    # normalization_factor = rsqrt(d); dividing by it == multiplying by sqrt(d).
    sqrt_d = math.sqrt(float(d))                             # compile-time constant

    out_dtype = q.dtype
    attn_dtype = q.dtype                                     # matches torch's return dtype

    has_mask = mask is not None
    mask_bytes = jnp.dtype(mask.dtype).itemsize if has_mask else 0
    tile_budget, vmem_limit = _vmem_budgets()
    tq = _choose_tq(Lq, Lk, D,
                    jnp.dtype(q.dtype).itemsize, mask_bytes,
                    jnp.dtype(out_dtype).itemsize, jnp.dtype(attn_dtype).itemsize,
                    budget=tile_budget)
    grid = (B, pl.cdiv(Lq, tq))

    # K/V block index is constant across the q-tile axis -> nothing to overlap beyond
    # one fetch per batch: single-buffer them to halve resident K/V VMEM.
    kv_mode = pl.Buffered(1)
    in_specs = [
        pl.BlockSpec((1, tq, D), lambda b, i: (b, i, 0)),                          # q tile
        pl.BlockSpec((1, Lk, D), lambda b, i: (b, 0, 0), pipeline_mode=kv_mode),   # full K
        pl.BlockSpec((1, Lk, D), lambda b, i: (b, 0, 0), pipeline_mode=kv_mode),   # full V
    ]
    args = [q, k, v]
    if has_mask:
        in_specs.append(pl.BlockSpec((1, tq, Lk), lambda b, i: (b, i, 0)))
        args.append(mask)

    out_specs = [
        pl.BlockSpec((1, tq, D), lambda b, i: (b, i, 0)),
        pl.BlockSpec((1, tq, Lk), lambda b, i: (b, i, 0)),
    ]

    kernel = functools.partial(_sdpa_kernel, sqrt_d=sqrt_d, has_mask=has_mask,
                               approx_recip=approx_recip, mxu_bf16=mxu_bf16)

    out, attn = pl.pallas_call(
        kernel,
        out_shape=(
            jax.ShapeDtypeStruct((B, Lq, D), out_dtype),
            jax.ShapeDtypeStruct((B, Lq, Lk), attn_dtype),
        ),
        grid_spec=pltpu.PrefetchScalarGridSpec(
            num_scalar_prefetch=0,
            grid=grid,
            in_specs=in_specs,
            out_specs=out_specs,
        ),
        compiler_params=pltpu.CompilerParams(
            # Both axes are independent; on megacore parts the split preferentially
            # keeps the constant-index K/V block resident per core.
            dimension_semantics=("parallel", "parallel"),
            vmem_limit_bytes=vmem_limit,
        ),
    )(*args)
    return out, attn


def _reference(q, k, v, d, mask=None):
    qf = q.astype(jnp.float32)
    kf = k.astype(jnp.float32)
    vf = v.astype(jnp.float32)
    s = jnp.einsum("bqd,bkd->bqk", qf, kf)
    attn = jax.nn.softmax(s, axis=-1)
    attn = attn * math.sqrt(float(d))                        # == attn / rsqrt(d)
    if mask is not None:
        attn = mask.astype(jnp.float32) * attn
    out = jnp.einsum("bqk,bkd->bqd", attn, vf)
    return out.astype(q.dtype), attn.astype(q.dtype)


def _check(name, got, want, atol, rtol):
    assert jnp.allclose(got, want, atol=atol, rtol=rtol), (
        f"{name} mismatch: max abs err = "
        f"{jnp.max(jnp.abs(got.astype(jnp.float32) - want.astype(jnp.float32)))}"
    )


if __name__ == "__main__":
    key = jax.random.PRNGKey(0)

    # --- small case (matches the module's typical toy shapes) -------------------
    B, Lq, Lk, D = 2, 8, 8, 32
    kq, kk, kv, km = jax.random.split(key, 4)
    q = jax.random.normal(kq, (B, Lq, D), dtype=jnp.float32)
    k = jax.random.normal(kk, (B, Lk, D), dtype=jnp.float32)
    v = jax.random.normal(kv, (B, Lk, D), dtype=jnp.float32)
    mask = (jax.random.uniform(km, (B, Lq, Lk)) > 0.2).astype(jnp.bfloat16)  # 0/1 mask

    # default fast path (approx EUP reciprocal): loose tolerance
    out0, attn0 = scaled_dot_product_attention(q, k, v, D, mask=None)
    out1, attn1 = scaled_dot_product_attention(q, k, v, D, mask=mask)
    # exact-reciprocal path: tight tolerance (validates the algorithm itself)
    out1e, attn1e = scaled_dot_product_attention(q, k, v, D, mask=mask,
                                                 approx_recip=False)
    jax.block_until_ready((out0, attn0, out1, attn1, out1e, attn1e))

    ro0, ra0 = _reference(q, k, v, D, mask=None)
    ro1, ra1 = _reference(q, k, v, D, mask=mask)
    _check("out (no mask, approx)", out0, ro0, 2e-2, 2e-2)
    _check("attn (no mask, approx)", attn0, ra0, 2e-2, 2e-2)
    _check("out (mask, approx)", out1, ro1, 2e-2, 2e-2)
    _check("attn (mask, approx)", attn1, ra1, 2e-2, 2e-2)
    _check("out (mask, exact)", out1e, ro1, 1e-5, 1e-5)
    _check("attn (mask, exact)", attn1e, ra1, 1e-5, 1e-5)

    # --- moderately larger case to exercise the q-tiling path -------------------
    B2, Lq2, Lk2, D2 = 2, 1024, 128, 32
    kq2, kk2, kv2, km2 = jax.random.split(jax.random.PRNGKey(1), 4)
    q2 = jax.random.normal(kq2, (B2, Lq2, D2), dtype=jnp.float32)
    k2 = jax.random.normal(kk2, (B2, Lk2, D2), dtype=jnp.float32)
    v2 = jax.random.normal(kv2, (B2, Lk2, D2), dtype=jnp.float32)
    mask2 = (jax.random.uniform(km2, (B2, Lq2, Lk2)) > 0.2).astype(jnp.bfloat16)

    out2, attn2 = scaled_dot_product_attention(q2, k2, v2, D2, mask=mask2)
    out2e, attn2e = scaled_dot_product_attention(q2, k2, v2, D2, mask=mask2,
                                                 approx_recip=False)
    jax.block_until_ready((out2, attn2, out2e, attn2e))
    ro2, ra2 = _reference(q2, k2, v2, D2, mask=mask2)
    _check("out (tiled, approx)", out2, ro2, 2e-2, 2e-2)
    _check("attn (tiled, approx)", attn2, ra2, 2e-2, 2e-2)
    _check("out (tiled, exact)", out2e, ro2, 1e-4, 1e-4)
    _check("attn (tiled, exact)", attn2e, ra2, 1e-4, 1e-4)

    print("KERNEL_OK")
</pallas_src>

<mosaic_0001>
module attributes {stable_mosaic.version = 11 : i64} {
  func.func @_sdpa_kernel(%arg0: i32, %arg1: i32, %arg2: memref<1x8x32xf32, #tpu.memory_space<vmem>>, %arg3: memref<1x8x32xf32, #tpu.memory_space<vmem>>, %arg4: memref<1x8x32xf32, #tpu.memory_space<vmem>>, %arg5: memref<1x8x32xf32, #tpu.memory_space<vmem>>, %arg6: memref<1x8x8xf32, #tpu.memory_space<vmem>>) attributes {dimension_semantics = [#tpu.dimension_semantics<parallel>, #tpu.dimension_semantics<parallel>], iteration_bounds = array<i64: 2, 1>, scalar_prefetch = 0 : i64, scratch_operands = 0 : i64, tpu.core_type = #tpu.core_type<tc>, window_params = [{transform_indices = @transform_0, window_bounds = array<i64: 1, 8, 32>}, {pipeline_mode = #tpu.pipeline_mode<synchronous>, transform_indices = @transform_1, window_bounds = array<i64: 1, 8, 32>}, {pipeline_mode = #tpu.pipeline_mode<synchronous>, transform_indices = @transform_2, window_bounds = array<i64: 1, 8, 32>}, {transform_indices = @transform_3, window_bounds = array<i64: 1, 8, 32>}, {transform_indices = @transform_4, window_bounds = array<i64: 1, 8, 8>}]} {
    %c0 = arith.constant 0 : index
    %c0_0 = arith.constant 0 : index
    %c0_1 = arith.constant 0 : index
    %0 = vector.load %arg2[%c0, %c0_0, %c0_1] : memref<1x8x32xf32, #tpu.memory_space<vmem>>, vector<1x8x32xf32>
    %1 = vector.shape_cast %0 : vector<1x8x32xf32> to vector<8x32xf32>
    %c0_2 = arith.constant 0 : index
    %c0_3 = arith.constant 0 : index
    %c0_4 = arith.constant 0 : index
    %2 = vector.load %arg3[%c0_2, %c0_3, %c0_4] : memref<1x8x32xf32, #tpu.memory_space<vmem>>, vector<1x8x32xf32>
    %3 = vector.shape_cast %2 : vector<1x8x32xf32> to vector<8x32xf32>
    %c0_5 = arith.constant 0 : index
    %c0_6 = arith.constant 0 : index
    %c0_7 = arith.constant 0 : index
    %4 = vector.load %arg4[%c0_5, %c0_6, %c0_7] : memref<1x8x32xf32, #tpu.memory_space<vmem>>, vector<1x8x32xf32>
    %5 = vector.shape_cast %4 : vector<1x8x32xf32> to vector<8x32xf32>
    %cst = arith.constant dense<0.000000e+00> : vector<8x8xf32>
    %6 = tpu.matmul %1, %3, %cst {dimension_numbers = #tpu.dot_dimension_numbers<[1], [1], [0], [0], [0, 0, 1, 0], [], []>} : vector<8x32xf32>, vector<8x32xf32>, vector<8x8xf32> -> vector<8x8xf32>
    %cst_8 = arith.constant dense<0xFF800000> : vector<8xf32>
    %7 = vector.multi_reduction <maximumf>, %6, %cst_8 [1] : vector<8x8xf32> to vector<8xf32>
    %8 = vector.shape_cast %7 : vector<8xf32> to vector<8x1xf32>
    %9 = vector.broadcast %8 : vector<8x1xf32> to vector<8x8xf32>
    %10 = arith.subf %6, %9 : vector<8x8xf32>
    %11 = math.exp %10 : vector<8x8xf32>
    %cst_9 = arith.constant dense<0.000000e+00> : vector<8xf32>
    %12 = vector.multi_reduction <add>, %11, %cst_9 [1] : vector<8x8xf32> to vector<8xf32>
    %13 = vector.shape_cast %12 : vector<8xf32> to vector<8x1xf32>
    %14 = tpu.reciprocal %13 {approx = true} : vector<8x1xf32> -> vector<8x1xf32>
    %cst_10 = arith.constant 5.65685415 : f32
    %15 = vector.broadcast %cst_10 : f32 to vector<8x1xf32>
    %16 = arith.mulf %14, %15 : vector<8x1xf32>
    %cst_11 = arith.constant dense<0.000000e+00> : vector<8x32xf32>
    %17 = tpu.matmul %11, %5, %cst_11 {dimension_numbers = #tpu.dot_dimension_numbers<[1], [0], [0], [1], [0, 0, 1, 1], [], []>} : vector<8x8xf32>, vector<8x32xf32>, vector<8x32xf32> -> vector<8x32xf32>
    %18 = vector.broadcast %16 : vector<8x1xf32> to vector<8x32xf32>
    %19 = arith.mulf %17, %18 : vector<8x32xf32>
    %c0_12 = arith.constant 0 : index
    %c0_13 = arith.constant 0 : index
    %c0_14 = arith.constant 0 : index
    %20 = vector.load %arg5[%c0_12, %c0_13, %c0_14] : memref<1x8x32xf32, #tpu.memory_space<vmem>>, vector<1x8x32xf32>
    %21 = vector.shape_cast %20 : vector<1x8x32xf32> to vector<8x32xf32>
    %22 = vector.shape_cast %19 : vector<8x32xf32> to vector<1x8x32xf32>
    tpu.vector_store %arg5[%c0_12, %c0_13, %c0_14], %22 {strides = array<i32>} : memref<1x8x32xf32, #tpu.memory_space<vmem>>, vector<1x8x32xf32>,
    %23 = vector.broadcast %16 : vector<8x1xf32> to vector<8x8xf32>
    %24 = arith.mulf %11, %23 : vector<8x8xf32>
    %c0_15 = arith.constant 0 : index
    %c0_16 = arith.constant 0 : index
    %c0_17 = arith.constant 0 : index
    %25 = vector.load %arg6[%c0_15, %c0_16, %c0_17] : memref<1x8x8xf32, #tpu.memory_space<vmem>>, vector<1x8x8xf32>
    %26 = vector.shape_cast %25 : vector<1x8x8xf32> to vector<8x8xf32>
    %27 = vector.shape_cast %24 : vector<8x8xf32> to vector<1x8x8xf32>
    tpu.vector_store %arg6[%c0_15, %c0_16, %c0_17], %27 {strides = array<i32>} : memref<1x8x8xf32, #tpu.memory_space<vmem>>, vector<1x8x8xf32>,
    return
  }
  func.func @transform_0(%arg0: i32, %arg1: i32) -> (i32, i32, i32) {
    %c0_i32 = arith.constant 0 : i32
    %c0_i32_0 = arith.constant 0 : i32
    return %arg0, %arg1, %c0_i32 : i32, i32, i32
  }
  func.func @transform_1(%arg0: i32, %arg1: i32) -> (i32, i32, i32) {
    %c0_i32 = arith.constant 0 : i32
    %c0_i32_0 = arith.constant 0 : i32
    %c0_i32_1 = arith.constant 0 : i32
    return %arg0, %c0_i32, %c0_i32_0 : i32, i32, i32
  }
  func.func @transform_2(%arg0: i32, %arg1: i32) -> (i32, i32, i32) {
    %c0_i32 = arith.constant 0 : i32
    %c0_i32_0 = arith.constant 0 : i32
    %c0_i32_1 = arith.constant 0 : i32
    return %arg0, %c0_i32, %c0_i32_0 : i32, i32, i32
  }
  func.func @transform_3(%arg0: i32, %arg1: i32) -> (i32, i32, i32) {
    %c0_i32 = arith.constant 0 : i32
    %c0_i32_0 = arith.constant 0 : i32
    return %arg0, %arg1, %c0_i32 : i32, i32, i32
  }
  func.func @transform_4(%arg0: i32, %arg1: i32) -> (i32, i32, i32) {
    %c0_i32 = arith.constant 0 : i32
    %c0_i32_0 = arith.constant 0 : i32
    return %arg0, %arg1, %c0_i32 : i32, i32, i32
  }
}

</mosaic_0001>

<llo_original>
// kernel: tpu_custom_call.1
$region0: #{tpu_custom_call.1}
  #allocation0 [shape = 'u32[]', space=smem, size = 0x4, offset = 0x4, fixed_abs, tag = 'smem constant byte address 0x4 - core index']
  #allocation1 [shape = 'u32[144,128]{1,0:T(1,128)}', space=vmem, size = 0x12000, scoped, tag = 'internal scratch']
  %s0 = inlined_call_operand.hbm [shape: f32[2,8,32], index: 0, kind: input, shape index: {}]
  %s1 = inlined_call_operand.hbm [shape: f32[2,8,32], index: 1, kind: input, shape index: {}]
  %s2 = inlined_call_operand.hbm [shape: f32[2,8,32], index: 2, kind: input, shape index: {}]
  %s3 = inlined_call_operand.hbm [shape: f32[2,8,32], index: 3, kind: output, shape index: {0}]
  %s4 = inlined_call_operand.hbm [shape: f32[2,8,8], index: 4, kind: output, shape index: {1}]
  %5 = xla_tuple %s3, %s4
  %s6 = sld [smem:[#allocation0]]
  $region65: #{tpu_custom_call.1} parent=0
    _
  %s8 = ssub.s32 1, %s6
  %s9 = scalar_select 0, %s8, %s6
  $region1: #{tpu_custom_call.1} parent=0
    #allocation2 [shape = 'u8[8192]{0}', space=vmem, size = 0x2000, scoped, tag = 'input window, operand 0']
    #allocation3 [shape = 's32[2]{0}', space=sflag, size = 0x8, scoped, tag = 'scoped memory for tpu_custom_call.1']
    #allocation4 [shape = 's32[2]{0}', space=sflag, size = 0x8, scoped, tag = 'scoped memory for tpu_custom_call.1']
    #allocation5 [shape = 'u8[4096]{0}', space=vmem, size = 0x1000, scoped, tag = 'input window, operand 1, single buffered']
    #allocation6 [shape = 's32[1]{0}', space=sflag, size = 0x4, scoped, tag = 'scoped memory for tpu_custom_call.1']
    #allocation7 [shape = 'u8[4096]{0}', space=vmem, size = 0x1000, scoped, tag = 'input window, operand 2, single buffered']
    #allocation8 [shape = 'u8[8192]{0}', space=vmem, size = 0x2000, scoped, tag = 'output window, operand 0']
    #allocation9 [shape = 'u8[8192]{0}', space=vmem, size = 0x2000, scoped, tag = 'output window, operand 1']
    #allocation10 [shape = 's32[2]{0}', space=sflag, size = 0x8, scoped, tag = 'scoped memory for tpu_custom_call.1']
    %10 = vsyncpa [#allocation3], 0
    %s11 = scalar_lea.sflag [#allocation3], 1
    %12 = vsyncpa %s11, 0
    %13 = vsyncpa [#allocation6], 0
    %14 = vsyncpa [#allocation4], 0
    %s15 = scalar_lea.sflag [#allocation4], 1
    %16 = vsyncpa %s15, 0
    %17 = vsyncpa [#allocation10], 0
    %s18 = scalar_lea.sflag [#allocation10], 1
    %19 = vsyncpa %s18, 0
    loop: start=0, step=1, limit=4
    $region2: #{tpu_custom_call.1} parent=1 // loop_pre_header
      _
    $region3: #{tpu_custom_call.1} parent=1 // loop_header
      %s21 = sphi 0, %s25
      %p22 = scmp.ge.s32.totalorder %s21, 4
      %s28 = sphi 0, %s40
      %s29 = sphi 0, %s36
      %s30 = sphi 0, %s28
      %s31 = sphi 0, %s29
      %s32 = sphi 0, %s30
      %s33 = sphi 0, %s31
      %s45 = sphi 0, %s47
      %s48 = sphi 0, %s45
      %s49 = sphi 0, %s48
      %s65 = sphi 0, %s49
      %s71 = sphi 0, %s73
      %s74 = sphi 0, %s71
      %s75 = sphi 0, %s74
      %s91 = sphi 0, %s75
      %s97 = sphi 0, %s99
      %s100 = sphi 0, %s97
      %s101 = sphi 0, %s100
      %s117 = sphi 0, %s101
      %s125 = sphi 0, %s127
      %s128 = sphi 0, %s125
      %s129 = sphi 0, %s128
      %s145 = sphi 0, %s129
      %s153 = sphi 0, %s155
      %s156 = sphi 0, %s153
      %s157 = sphi 0, %s156
      %s173 = sphi 0, %s157
    $region4: #{tpu_custom_call.1} parent=1 // loop_header_branch
      %24 = sbr.rel (%p22) target = $region8
    $region5: #{tpu_custom_call.1} parent=1 // loop_body
      %s26 = ssub.s32 %s21, 1
      %s27 = ssub.s32 %s21, 2
      %s34 = sadd.s32 1, %s29
      %p35 = scmp.ge.s32.totalorder %s34, 1
      %s36 = scalar_select %p35, 0, %s34
      %s37 = sadd.s32 1, %s28
      %s38 = scalar_select %p35, %s37, %s28
      %p39 = scmp.ge.s32.totalorder %s38, 2
      %s40 = scalar_select %p39, 0, %s38
      %s41 = ssub.s32 %s28, %s40
      %s42 = ssub.s32 %s29, %s36
      %s43 = sor.u32 %s41, %s42
      %p44 = scmp.eq.s32.totalorder %s43, 0
      %s46 = sadd.s32 %s45, 1
      %s47 = scalar_select %p44, %s45, %s46
      %p50 = pneg %p44
      %p51 = scmp.eq.s32.totalorder %s21, 1
      %p52 = por %p50, %p51
      %p53 = scmp.ne.s32.totalorder %s45, %s48
      %p54 = scmp.eq.s32.totalorder %s21, 0
      %p55 = por %p53, %p54
      %p56 = scmp.ne.s32.totalorder %s45, %s48
      %p57 = scmp.eq.s32.totalorder %s26, 1
      %p58 = por %p56, %p57
      %p59 = scmp.ne.s32.totalorder %s48, %s49
      %p60 = scmp.eq.s32.totalorder %s26, 0
      %p61 = por %p59, %p60
      %p62 = scmp.ne.s32.totalorder %s48, %s49
      %p63 = scmp.eq.s32.totalorder %s27, 1
      %p64 = por %p62, %p63
      %p66 = scmp.ne.s32.totalorder %s49, %s65
      %p67 = scmp.eq.s32.totalorder %s27, 0
      %p68 = por %p66, %p67
      %s69 = ssub.s32 %s28, %s40
      %p70 = scmp.eq.s32.totalorder %s69, 0
      %s72 = sadd.s32 %s71, 1
      %s73 = scalar_select %p70, %s71, %s72
      %p76 = pneg %p70
      %p77 = scmp.eq.s32.totalorder %s21, 1
      %p78 = por %p76, %p77
      %p79 = scmp.ne.s32.totalorder %s71, %s74
      %p80 = scmp.eq.s32.totalorder %s21, 0
      %p81 = por %p79, %p80
      %p82 = scmp.ne.s32.totalorder %s71, %s74
      %p83 = scmp.eq.s32.totalorder %s26, 1
      %p84 = por %p82, %p83
      %p85 = scmp.ne.s32.totalorder %s74, %s75
      %p86 = scmp.eq.s32.totalorder %s26, 0
      %p87 = por %p85, %p86
      %p88 = scmp.ne.s32.totalorder %s74, %s75
      %p89 = scmp.eq.s32.totalorder %s27, 1
      %p90 = por %p88, %p89
      %p92 = scmp.ne.s32.totalorder %s75, %s91
      %p93 = scmp.eq.s32.totalorder %s27, 0
      %p94 = por %p92, %p93
      %s95 = ssub.s32 %s28, %s40
      %p96 = scmp.eq.s32.totalorder %s95, 0
      %s98 = sadd.s32 %s97, 1
      %s99 = scalar_select %p96, %s97, %s98
      %p102 = pneg %p96
      %p103 = scmp.eq.s32.totalorder %s21, 1
      %p104 = por %p102, %p103
      %p105 = scmp.ne.s32.totalorder %s97, %s100
      %p106 = scmp.eq.s32.totalorder %s21, 0
      %p107 = por %p105, %p106
      %p108 = scmp.ne.s32.totalorder %s97, %s100
      %p109 = scmp.eq.s32.totalorder %s26, 1
      %p110 = por %p108, %p109
      %p111 = scmp.ne.s32.totalorder %s100, %s101
      %p112 = scmp.eq.s32.totalorder %s26, 0
      %p113 = por %p111, %p112
      %p114 = scmp.ne.s32.totalorder %s100, %s101
      %p115 = scmp.eq.s32.totalorder %s27, 1
      %p116 = por %p114, %p115
      %p118 = scmp.ne.s32.totalorder %s101, %s117
      %p119 = scmp.eq.s32.totalorder %s27, 0
      %p120 = por %p118, %p119
      %s121 = ssub.s32 %s28, %s40
      %s122 = ssub.s32 %s29, %s36
      %s123 = sor.u32 %s121, %s122
      %p124 = scmp.eq.s32.totalorder %s123, 0
      %s126 = sadd.s32 %s125, 1
      %s127 = scalar_select %p124, %s125, %s126
      %p130 = pneg %p124
      %p131 = scmp.eq.s32.totalorder %s21, 1
      %p132 = por %p130, %p131
      %p133 = scmp.ne.s32.totalorder %s125, %s128
      %p134 = scmp.eq.s32.totalorder %s21, 0
      %p135 = por %p133, %p134
      %p136 = scmp.ne.s32.totalorder %s125, %s128
      %p137 = scmp.eq.s32.totalorder %s26, 1
      %p138 = por %p136, %p137
      %p139 = scmp.ne.s32.totalorder %s128, %s129
      %p140 = scmp.eq.s32.totalorder %s26, 0
      %p141 = por %p139, %p140
      %p142 = scmp.ne.s32.totalorder %s128, %s129
      %p143 = scmp.eq.s32.totalorder %s27, 1
      %p144 = por %p142, %p143
      %p146 = scmp.ne.s32.totalorder %s129, %s145
      %p147 = scmp.eq.s32.totalorder %s27, 0
      %p148 = por %p146, %p147
      %s149 = ssub.s32 %s28, %s40
      %s150 = ssub.s32 %s29, %s36
      %s151 = sor.u32 %s149, %s150
      %p152 = scmp.eq.s32.totalorder %s151, 0
      %s154 = sadd.s32 %s153, 1
      %s155 = scalar_select %p152, %s153, %s154
      %p158 = pneg %p152
      %p159 = scmp.eq.s32.totalorder %s21, 1
      %p160 = por %p158, %p159
      %p161 = scmp.ne.s32.totalorder %s153, %s156
      %p162 = scmp.eq.s32.totalorder %s21, 0
      %p163 = por %p161, %p162
      %p164 = scmp.ne.s32.totalorder %s153, %s156
      %p165 = scmp.eq.s32.totalorder %s26, 1
      %p166 = por %p164, %p165
      %p167 = scmp.ne.s32.totalorder %s156, %s157
      %p168 = scmp.eq.s32.totalorder %s26, 0
      %p169 = por %p167, %p168
      %p170 = scmp.ne.s32.totalorder %s156, %s157
      %p171 = scmp.eq.s32.totalorder %s27, 1
      %p172 = por %p170, %p171
      %p174 = scmp.ne.s32.totalorder %s157, %s173
      %p175 = scmp.eq.s32.totalorder %s27, 0
      %p176 = por %p174, %p175
      %p177 = scmp.le.s32.totalorder 1, %s21
      %p178 = scmp.lt.s32.totalorder %s21, 3
      %p179 = pnand %p177, %p178
      %p180 = pneg %p179
      // Predicated region
      $region9: #{tpu_custom_call.1} parent=5 // pred_check
        _
      $region10: #{tpu_custom_call.1} parent=5 // pred_check_branch
        %182 = sbr.rel (%p179) target = $region12
      $region11: #{tpu_custom_call.1} parent=5 // pred_region
        %s183 = ssub.s32 %s21, 1
        // Predicated region
        $region13: #{tpu_custom_call.1} parent=11 // pred_check
          %p184 = pneg %p87
        $region14: #{tpu_custom_call.1} parent=11 // pred_check_branch
          %186 = sbr.rel (%p184) target = $region16
        $region15: #{tpu_custom_call.1} parent=11 // pred_region
          %s188 = ssub.s32 128, 128
          %189 = vsyncadd [#allocation6], %s188
          %s190 = smul.addr %s30, 128
          %s191 = scalar_lea.hbm %s1, %s190
          %s193 = sshll.u32 [#allocation5], 4
          %s194 = int_to_ptr.vmem [resolvable:$true] %s193
          %196 = dma.hbm_to_vmem [thread:$0]  %s191, 128, %s194, [#allocation6]
        $region16: #{tpu_custom_call.1} parent=11 // pred_fallthru
          _
        // Predicated region
        $region17: #{tpu_custom_call.1} parent=11 // pred_check
          %p197 = pneg %p113
        $region18: #{tpu_custom_call.1} parent=11 // pred_check_branch
          %199 = sbr.rel (%p197) target = $region20
        $region19: #{tpu_custom_call.1} parent=11 // pred_region
          %s201 = ssub.s32 128, 128
          %202 = vsyncadd [#allocation6], %s201
          %s203 = smul.addr %s30, 128
          %s204 = scalar_lea.hbm %s2, %s203
          %s206 = sshll.u32 [#allocation7], 4
          %s207 = int_to_ptr.vmem [resolvable:$true] %s206
          %209 = dma.hbm_to_vmem [thread:$0]  %s204, 128, %s207, [#allocation6]
        $region20: #{tpu_custom_call.1} parent=11 // pred_fallthru
          _
      $region12: #{tpu_custom_call.1} parent=5 // pred_fallthru
        _
      %p210 = scmp.lt.s32.totalorder %s21, 2
      // Predicated region
      $region21: #{tpu_custom_call.1} parent=5 // pred_check
        %p211 = pneg %p210
      $region22: #{tpu_custom_call.1} parent=5 // pred_check_branch
        %213 = sbr.rel (%p211) target = $region24
      $region23: #{tpu_custom_call.1} parent=5 // pred_region
        // Predicated region
        $region25: #{tpu_custom_call.1} parent=23 // pred_check
          %p214 = pneg %p55
        $region26: #{tpu_custom_call.1} parent=23 // pred_check_branch
          %216 = sbr.rel (%p214) target = $region28
        $region27: #{tpu_custom_call.1} parent=23 // pred_region
          %s217 = sand.u32 %s45, 1
          %s218 = scalar_lea.sflag [#allocation3], %s217
          %s219 = sand.u32 %s45, 1
          %s220 = smul.addr %s219, 8
          %s221 = scalar_lea.vmem [#allocation2], %s220
          %s223 = ssub.s32 128, 128
          %224 = vsyncadd %s218, %s223
          %s225 = sadd.s32 %s29, %s28
          %s226 = smul.addr %s225, 128
          %s227 = scalar_lea.hbm %s0, %s226
          %s229 = sshll.u32 %s221, 4
          %s230 = int_to_ptr.vmem [resolvable:$true] %s229
          %232 = dma.hbm_to_vmem [thread:$0]  %s227, 128, %s230, %s218
        $region28: #{tpu_custom_call.1} parent=23 // pred_fallthru
          _
      $region24: #{tpu_custom_call.1} parent=5 // pred_fallthru
        _
      %p233 = scmp.le.s32.totalorder 1, %s21
      %p234 = scmp.lt.s32.totalorder %s21, 3
      %p235 = pnand %p233, %p234
      %p236 = pneg %p235
      // Predicated region
      $region29: #{tpu_custom_call.1} parent=5 // pred_check
        _
      $region30: #{tpu_custom_call.1} parent=5 // pred_check_branch
        %238 = sbr.rel (%p235) target = $region32
      $region31: #{tpu_custom_call.1} parent=5 // pred_region
        %s239 = ssub.s32 %s21, 1
        %s240 = sand.u32 %s48, 1
        %s241 = scalar_lea.sflag [#allocation3], %s240
        %s242 = sand.u32 %s48, 1
        %s243 = smul.addr %s242, 8
        %s244 = scalar_lea.vmem [#allocation2], %s243
        // Predicated region
        $region33: #{tpu_custom_call.1} parent=31 // pred_check
          %p245 = pneg %p61
        $region34: #{tpu_custom_call.1} parent=31 // pred_check_branch
          %247 = sbr.rel (%p245) target = $region36
        $region35: #{tpu_custom_call.1} parent=31 // pred_region
          %248 = dma.done %s241, 128
        $region36: #{tpu_custom_call.1} parent=31 // pred_fallthru
          _
        // Predicated region
        $region37: #{tpu_custom_call.1} parent=31 // pred_check
          %p249 = pneg %p87
        $region38: #{tpu_custom_call.1} parent=31 // pred_check_branch
          %251 = sbr.rel (%p249) target = $region40
        $region39: #{tpu_custom_call.1} parent=31 // pred_region
          %252 = dma.done [#allocation6], 128
        $region40: #{tpu_custom_call.1} parent=31 // pred_fallthru
          _
        // Predicated region
        $region41: #{tpu_custom_call.1} parent=31 // pred_check
          %p253 = pneg %p113
        $region42: #{tpu_custom_call.1} parent=31 // pred_check_branch
          %255 = sbr.rel (%p253) target = $region44
        $region43: #{tpu_custom_call.1} parent=31 // pred_region
          %256 = dma.done [#allocation6], 128
        $region44: #{tpu_custom_call.1} parent=31 // pred_fallthru
          _
        %s257 = sand.u32 %s48, 1
        %s258 = scalar_lea.sflag [#allocation3], %s257
        %s259 = sand.u32 %s48, 1
        %s260 = smul.addr %s259, 8
        %s261 = scalar_lea.vmem [#allocation2], %s260
        %p262 = pneg %p61
        %p263 = pneg %p58
        %p264 = pneg %p87
        %p265 = pneg %p84
        %p266 = pneg %p113
        %p267 = pneg %p110
        %p268 = pneg %p141
        %p269 = pneg %p138
        %s270 = sand.u32 %s128, 1
        %s271 = scalar_lea.sflag [#allocation4], %s270
        %s272 = sand.u32 %s128, 1
        %s273 = smul.addr %s272, 8
        %s274 = scalar_lea.vmem [#allocation8], %s273
        %p275 = pneg %p169
        %p276 = pneg %p166
        %s277 = sand.u32 %s156, 1
        %s278 = scalar_lea.sflag [#allocation10], %s277
        %s279 = sand.u32 %s156, 1
        %s280 = smul.addr %s279, 8
        %s281 = scalar_lea.vmem [#allocation9], %s280
        %v282 = vld [vmem:[%s244] sm:$0xff]
        %v283 = vld [vmem:[#allocation5] sm:$0xff]
        %v284 = vld [vmem:[#allocation7] sm:$0xff]
        %vm285 = vcmask 261120
        %v287 = vsel %vm285, %v282, 0
        %v290 = vsel %vm285, %v283, 0
        %292 = vmatprep.subr.mxu0 0.0
        %293 = vmatpush1.xpose.msra.mxu0 0.0
        %294 = vmatprep.subr.mxu0 0.0
        %295 = vmatpush1.xpose.msra.mxu0 0.0
        %296 = vmatprep.subr.mxu0 0.0
        %297 = vmatpush1.xpose.msra.mxu0 0.0
        %298 = vmatprep.subr.mxu0 0.0
        %299 = vmatpush1.xpose.msra.mxu0 0.0
        %300 = vmatprep.subr.mxu0 0.0
        %301 = vmatpush1.xpose.msra.mxu0 0.0
        %302 = vmatprep.subr.mxu0 0.0
        %303 = vmatpush1.xpose.msra.mxu0 0.0
        %304 = vmatprep.subr.mxu0 0.0
        %305 = vmatpush1.xpose.msra.mxu0 0.0
        %306 = vmatprep.subr.mxu0 0.0
        %307 = vmatpush1.xpose.msra.mxu0 0.0
        %308 = vmatprep.subr.mxu0 0.0
        %309 = vmatpush1.xpose.msra.mxu0 0.0
        %310 = vmatprep.subr.mxu0 0.0
        %311 = vmatpush1.xpose.msra.mxu0 0.0
        %312 = vmatprep.subr.mxu0 0.0
        %313 = vmatpush1.xpose.msra.mxu0 0.0
        %314 = vmatprep.subr.mxu0 0.0
        %315 = vmatpush1.xpose.msra.mxu0 0.0
        %316 = vmatprep.subr.mxu0 0.0
        %317 = vmatpush1.xpose.msra.mxu0 0.0
        %318 = vmatprep.subr.mxu0 0.0
        %319 = vmatpush1.xpose.msra.mxu0 0.0
        %320 = vmatprep.subr.mxu0 0.0
        %321 = vmatpush1.xpose.msra.mxu0 0.0
        %322 = vmatprep.subr.mxu0 0.0
        %323 = vmatpush1.xpose.msra.mxu0 %v290
        %324 = vmatprep.subr.mxu0 0.0
        %325 = vmatpush2.xpose.msra.mxu0 0.0
        %326 = vmatprep.subr.mxu0 0.0
        %327 = vmatpush2.xpose.msra.mxu0 0.0
        %328 = vmatprep.subr.mxu0 0.0
        %329 = vmatpush2.xpose.msra.mxu0 0.0
        %330 = vmatprep.subr.mxu0 0.0
        %331 = vmatpush2.xpose.msra.mxu0 0.0
        %332 = vmatprep.subr.mxu0 0.0
        %333 = vmatpush2.xpose.msra.mxu0 0.0
        %334 = vmatprep.subr.mxu0 0.0
        %335 = vmatpush2.xpose.msra.mxu0 0.0
        %336 = vmatprep.subr.mxu0 0.0
        %337 = vmatpush2.xpose.msra.mxu0 0.0
        %338 = vmatprep.subr.mxu0 0.0
        %339 = vmatpush2.xpose.msra.mxu0 0.0
        %340 = vmatprep.subr.mxu0 0.0
        %341 = vmatpush2.xpose.msra.mxu0 0.0
        %342 = vmatprep.subr.mxu0 0.0
        %343 = vmatpush2.xpose.msra.mxu0 0.0
        %344 = vmatprep.subr.mxu0 0.0
        %345 = vmatpush2.xpose.msra.mxu0 0.0
        %346 = vmatprep.subr.mxu0 0.0
        %347 = vmatpush2.xpose.msra.mxu0 0.0
        %348 = vmatprep.subr.mxu0 0.0
        %349 = vmatpush2.xpose.msra.mxu0 0.0
        %350 = vmatprep.subr.mxu0 0.0
        %351 = vmatpush2.xpose.msra.mxu0 0.0
        %352 = vmatprep.subr.mxu0 0.0
        %353 = vmatpush2.xpose.msra.mxu0 0.0
        %354 = vmatprep.subr.mxu0 0.0
        %355 = vmatpush2.xpose.msra.mxu0 0.0
        %356 = vmatprep.mubr.f32.mxu0 0.0
        %357 = vmatmul.mubr.f32.gmra.mxu0 %v287
        %v358 = vpop.f32.mrf.mxu0
        %v359 = vadd.f32 0.0, %v358
        %v360 = vpop.f32.mrf.mxu0
        %361 = vdwg.mxu0
        %vm362 = vcmask 64512
        %v363 = vsel %vm362, %v359, -inf
        %364 = vmax.xlane.f32.xlu0 %v363
        %v365 = vpop.xlane.xlu0 %364
        %v366 = vsub.f32 %v359, %v365
        %v367 = vmul.f32 %v366, 1.442695
        %v368 = vpow.pop %v367
        %v369 = vsel %vm362, %v368, 0.0
        %370 = vadd.xlane.f32.xlu0 %v369
        %v371 = vpop.xlane.xlu0 %370
        %v372 = vrcp.pop %v371
        %v373 = vmul.f32 %v372, 5.656854
        %v375 = vsel %vm362, %v368, 0
        %377 = vmatprep.subr.mxu0 0.0
        %378 = vmatpush1.msra.mxu0 0.0
        %379 = vmatprep.subr.mxu0 0.0
        %380 = vmatpush1.msra.mxu0 0.0
        %381 = vmatprep.subr.mxu0 0.0
        %382 = vmatpush1.msra.mxu0 0.0
        %383 = vmatprep.subr.mxu0 0.0
        %384 = vmatpush1.msra.mxu0 0.0
        %385 = vmatprep.subr.mxu0 0.0
        %386 = vmatpush1.msra.mxu0 0.0
        %387 = vmatprep.subr.mxu0 0.0
        %388 = vmatpush1.msra.mxu0 0.0
        %389 = vmatprep.subr.mxu0 0.0
        %390 = vmatpush1.msra.mxu0 0.0
        %391 = vmatprep.subr.mxu0 0.0
        %392 = vmatpush1.msra.mxu0 0.0
        %393 = vmatprep.subr.mxu0 0.0
        %394 = vmatpush1.msra.mxu0 0.0
        %395 = vmatprep.subr.mxu0 0.0
        %396 = vmatpush1.msra.mxu0 0.0
        %397 = vmatprep.subr.mxu0 0.0
        %398 = vmatpush1.msra.mxu0 0.0
        %399 = vmatprep.subr.mxu0 0.0
        %400 = vmatpush1.msra.mxu0 0.0
        %401 = vmatprep.subr.mxu0 0.0
        %402 = vmatpush1.msra.mxu0 0.0
        %403 = vmatprep.subr.mxu0 0.0
        %404 = vmatpush1.msra.mxu0 0.0
        %405 = vmatprep.subr.mxu0 0.0
        %406 = vmatpush1.msra.mxu0 0.0
        %407 = vmatprep.subr.mxu0 0.0
        %408 = vmatpush1.msra.mxu0 %v284
        %409 = vmatprep.subr.mxu0 0.0
        %410 = vmatpush2.msra.mxu0 0.0
        %411 = vmatprep.subr.mxu0 0.0
        %412 = vmatpush2.msra.mxu0 0.0
        %413 = vmatprep.subr.mxu0 0.0
        %414 = vmatpush2.msra.mxu0 0.0
        %415 = vmatprep.subr.mxu0 0.0
        %416 = vmatpush2.msra.mxu0 0.0
        %417 = vmatprep.subr.mxu0 0.0
        %418 = vmatpush2.msra.mxu0 0.0
        %419 = vmatprep.subr.mxu0 0.0
        %420 = vmatpush2.msra.mxu0 0.0
        %421 = vmatprep.subr.mxu0 0.0
        %422 = vmatpush2.msra.mxu0 0.0
        %423 = vmatprep.subr.mxu0 0.0
        %424 = vmatpush2.msra.mxu0 0.0
        %425 = vmatprep.subr.mxu0 0.0
        %426 = vmatpush2.msra.mxu0 0.0
        %427 = vmatprep.subr.mxu0 0.0
        %428 = vmatpush2.msra.mxu0 0.0
        %429 = vmatprep.subr.mxu0 0.0
        %430 = vmatpush2.msra.mxu0 0.0
        %431 = vmatprep.subr.mxu0 0.0
        %432 = vmatpush2.msra.mxu0 0.0
        %433 = vmatprep.subr.mxu0 0.0
        %434 = vmatpush2.msra.mxu0 0.0
        %435 = vmatprep.subr.mxu0 0.0
        %436 = vmatpush2.msra.mxu0 0.0
        %437 = vmatprep.subr.mxu0 0.0
        %438 = vmatpush2.msra.mxu0 0.0
        %439 = vmatprep.subr.mxu0 0.0
        %440 = vmatpush2.msra.mxu0 0.0
        %441 = vmatprep.mubr.f32.mxu0 0.0
        %442 = vmatmul.mubr.f32.gmra.mxu0 %v375
        %v443 = vpop.f32.mrf.mxu0
        %v444 = vadd.f32 0.0, %v443
        %v445 = vpop.f32.mrf.mxu0
        %446 = vdwg.mxu0
        %v447 = vmul.f32 %v444, %v373
        %448 = vst.msk [vmem:[%s274] sm:$0xff] %vm285, %v447
        %v449 = vmul.f32 %v368, %v373
        %450 = vst.msk [vmem:[%s281] sm:$0xff] %vm362, %v449
        %s451 = sand.u32 %s128, 1
        %s452 = scalar_lea.sflag [#allocation4], %s451
        %s453 = sand.u32 %s128, 1
        %s454 = smul.addr %s453, 8
        %s455 = scalar_lea.vmem [#allocation8], %s454
        %s456 = sand.u32 %s156, 1
        %s457 = scalar_lea.sflag [#allocation10], %s456
        %s458 = sand.u32 %s156, 1
        %s459 = smul.addr %s458, 8
        %s460 = scalar_lea.vmem [#allocation9], %s459
        // Predicated region
        $region45: #{tpu_custom_call.1} parent=31 // pred_check
          %p461 = pneg %p138
        $region46: #{tpu_custom_call.1} parent=31 // pred_check_branch
          %463 = sbr.rel (%p461) target = $region48
        $region47: #{tpu_custom_call.1} parent=31 // pred_region
          %s465 = ssub.s32 128, 128
          %466 = vsyncadd %s452, %s465
          %s467 = sadd.s32 %s31, %s30
          %s468 = smul.addr %s467, 128
          %s469 = scalar_lea.hbm %s3, %s468
          %s471 = sshll.u32 %s455, 4
          %s472 = int_to_ptr.vmem [resolvable:$true] %s471
          %474 = dma.vmem_to_hbm [thread:$0]  %s472, 128, %s469, %s452
        $region48: #{tpu_custom_call.1} parent=31 // pred_fallthru
          _
        // Predicated region
        $region49: #{tpu_custom_call.1} parent=31 // pred_check
          %p475 = pneg %p166
        $region50: #{tpu_custom_call.1} parent=31 // pred_check_branch
          %477 = sbr.rel (%p475) target = $region52
        $region51: #{tpu_custom_call.1} parent=31 // pred_region
          %s479 = ssub.s32 128, 128
          %480 = vsyncadd %s457, %s479
          %s481 = sadd.s32 %s31, %s30
          %s482 = smul.addr %s481, 128
          %s483 = scalar_lea.hbm %s4, %s482
          %s485 = sshll.u32 %s460, 4
          %s486 = int_to_ptr.vmem [resolvable:$true] %s485
          %488 = dma.vmem_to_hbm [thread:$0]  %s486, 128, %s483, %s457
        $region52: #{tpu_custom_call.1} parent=31 // pred_fallthru
          _
      $region32: #{tpu_custom_call.1} parent=5 // pred_fallthru
        _
      %p489 = scmp.le.s32.totalorder 2, %s21
      // Predicated region
      $region53: #{tpu_custom_call.1} parent=5 // pred_check
        %p490 = pneg %p489
      $region54: #{tpu_custom_call.1} parent=5 // pred_check_branch
        %492 = sbr.rel (%p490) target = $region56
      $region55: #{tpu_custom_call.1} parent=5 // pred_region
        %s493 = ssub.s32 %s21, 2
        // Predicated region
        $region57: #{tpu_custom_call.1} parent=55 // pred_check
          %p494 = pneg %p144
        $region58: #{tpu_custom_call.1} parent=55 // pred_check_branch
          %496 = sbr.rel (%p494) target = $region60
        $region59: #{tpu_custom_call.1} parent=55 // pred_region
          %s497 = sand.u32 %s129, 1
          %s498 = scalar_lea.sflag [#allocation4], %s497
          %s499 = sand.u32 %s129, 1
          %s500 = smul.addr %s499, 8
          %s501 = scalar_lea.vmem [#allocation8], %s500
          %502 = dma.done %s498, 128
        $region60: #{tpu_custom_call.1} parent=55 // pred_fallthru
          _
        // Predicated region
        $region61: #{tpu_custom_call.1} parent=55 // pred_check
          %p503 = pneg %p172
        $region62: #{tpu_custom_call.1} parent=55 // pred_check_branch
          %505 = sbr.rel (%p503) target = $region64
        $region63: #{tpu_custom_call.1} parent=55 // pred_region
          %s506 = sand.u32 %s157, 1
          %s507 = scalar_lea.sflag [#allocation10], %s506
          %s508 = sand.u32 %s157, 1
          %s509 = smul.addr %s508, 8
          %s510 = scalar_lea.vmem [#allocation9], %s509
          %511 = dma.done %s507, 128
        $region64: #{tpu_custom_call.1} parent=55 // pred_fallthru
          _
      $region56: #{tpu_custom_call.1} parent=5 // pred_fallthru
        _
    $region6: #{tpu_custom_call.1} parent=1 // loop_footer
      %s25 = sadd.s32 1, %s21
    $region7: #{tpu_custom_call.1} parent=1 // loop_footer_branch
      %20 = sbr.rel target = $region3
    $region8: #{tpu_custom_call.1} parent=1 // loop_exit
      _
    %512 = vsyncpa [#allocation3], 1
    %s513 = scalar_lea.sflag [#allocation3], 1
    %514 = vsyncpa %s513, 1
    %515 = vsyncpa [#allocation6], 1
    %516 = vsyncpa [#allocation4], 1
    %s517 = scalar_lea.sflag [#allocation4], 1
    %518 = vsyncpa %s517, 1
    %519 = vsyncpa [#allocation10], 1
    %s520 = scalar_lea.sflag [#allocation10], 1
    %521 = vsyncpa %s520, 1

</llo_original>
